<compile_context>
chip_gen: v7x
topology: tpu7x:2x2x1
jax: 0.10.0
libtpu: 0.0.40
codegen_flags: <defaults>
</compile_context>

<pallas_src>
import math

import jax
import jax.numpy as jnp
from jax import lax
from jax.experimental import pallas as pl
from jax.experimental.pallas import tpu as pltpu


def _make_kernel(bn, cin, cout, tho, in_rows, w_in, wo):
    """Kernel for one (batch-block, row-block) grid step.

    x_ref : (bn, cin, in_rows, w_in)  full-resolution input rows (VMEM)
    w_ref : (cout, cin)               precomputed noisy weight (VMEM, resident)
    o_ref : (bn, cout, tho, wo)       stride-2 1x1-conv output block
    """

    def kernel(x_ref, w_ref, o_ref):
        f32 = jnp.float32
        # Exact one-hot selection matrices for the stride-2 subsample, built
        # from 2-D iotas (VPU): row_sel[r, h] = (h == 2r), col_sel[w, v] = (w == 2v).
        row_sel = jnp.where(
            lax.broadcasted_iota(jnp.int32, (tho, in_rows), 1)
            == 2 * lax.broadcasted_iota(jnp.int32, (tho, in_rows), 0),
            1.0, 0.0).astype(f32)
        col_sel = jnp.where(
            lax.broadcasted_iota(jnp.int32, (w_in, wo), 0)
            == 2 * lax.broadcasted_iota(jnp.int32, (w_in, wo), 1),
            1.0, 0.0).astype(f32)

        wv = w_ref[...]  # (cout, cin), DMA'd once, stays VMEM-resident

        for b in range(bn):                     # static unroll (bn is small)
            # Subsample each input channel in VMEM: (in_rows, W) -> (tho, Wo).
            xs = []
            for ci in range(cin):
                x_bc = x_ref[b, ci].astype(f32)                    # (in_rows, W)
                x_rows = jnp.dot(row_sel, x_bc,
                                 preferred_element_type=f32)       # even rows
                xs.append(jnp.dot(x_rows, col_sel,
                                  preferred_element_type=f32))     # even cols
            # 1x1 channel mix as Cin broadcast-FMAs on the VPU (cin/cout tiny
            # here -> MXU channel mix would be pure layout overhead).
            # TODO(synk): MXU channel-mix path when min(cin, cout) >= 32.
            for co in range(cout):
                acc = wv[co:co + 1, 0:1] * xs[0]
                for ci in range(1, cin):
                    acc = acc + wv[co:co + 1, ci:ci + 1] * xs[ci]
                o_ref[b, co] = acc.astype(o_ref.dtype)

    return kernel


def shortcut_c_forward(x_nchw, weight, weight_s, noise, *,
                       target_block_bytes=2 << 20):
    """Forward of ShortcutC with NoisyConv2d (fp=False, mode='noisy').

    x_nchw:   (N, Cin, H, W)     float32
    weight:   (Cout, Cin, 1, 1)  conv weight
    weight_s: (Cout, Cin, 1, 1)  noise-scale logits
    noise:    (Cout, Cin, 1, 1)  uniform(-1, 1) samples (torch.empty_like().uniform_)
    returns:  (N, Cout, Ho, Wo)  with Ho = floor((H-1)/2)+1, Wo = floor((W-1)/2)+1
    """
    n, cin, h, w = x_nchw.shape
    cout = weight.shape[0]
    ho = (h - 1) // 2 + 1
    wo = (w - 1) // 2 + 1
    itemsize = jnp.dtype(x_nchw.dtype).itemsize

    # Noisy weight precomputed once in the wrapper (tiny (Cout, Cin) XLA op).
    w_noisy = (weight + jax.nn.sigmoid(weight_s) * noise).reshape(cout, cin)
    w_noisy = w_noisy.astype(jnp.float32)

    # ---- Tile selection --------------------------------------------------
    def slab_bytes(bn_, tho_, in_rows_):
        return bn_ * (cin * in_rows_ * w + cout * tho_ * wo) * itemsize

    # Rows: full height unless the per-image slab exceeds the budget.  When
    # tiling, use a multiple of 8 that divides Ho exactly, so every block is
    # fully in-bounds (the one-hot row-select must never sum OOB padding).
    tho, in_rows = ho, h
    if slab_bytes(1, ho, h) > target_block_bytes:
        for cand in range((ho // 8) * 8, 7, -8):
            if ho % cand == 0 and slab_bytes(1, cand, 2 * cand) <= target_block_bytes:
                tho, in_rows = cand, 2 * cand
                break
    num_row_blocks = pl.cdiv(ho, tho)

    # Batch: large enough to amortize the ~0.35 us per-grid-step overhead
    # (capped to keep the static unroll small), but keep >= 2 total grid steps
    # when possible so both v7x TensorCores get work.
    bn = max(1, min(n, 8, target_block_bytes // max(slab_bytes(1, tho, in_rows), 1)))
    if pl.cdiv(n, bn) * num_row_blocks < 2 and n >= 2:
        bn = pl.cdiv(n, 2)
    num_batch_blocks = pl.cdiv(n, bn)

    grid = (num_batch_blocks, num_row_blocks)
    kernel = _make_kernel(bn, cin, cout, tho, in_rows, w, wo)

    cost = pl.CostEstimate(
        flops=2 * n * cout * cin * ho * wo,
        transcendentals=0,
        bytes_accessed=(n * cin * h * w + n * cout * ho * wo + cout * cin) * itemsize,
    )

    out = pl.pallas_call(
        kernel,
        out_shape=jax.ShapeDtypeStruct((n, cout, ho, wo), x_nchw.dtype),
        grid_spec=pltpu.PrefetchScalarGridSpec(
            num_scalar_prefetch=0,
            grid=grid,
            in_specs=[
                # Full-resolution activation rows: the stride-2 subsample is
                # done in VMEM, so no subsampled intermediate hits HBM.
                pl.BlockSpec((bn, cin, in_rows, w), lambda b, r: (b, 0, r, 0)),
                # Precomputed noisy weight: constant index_map -> fetched once.
                pl.BlockSpec((cout, cin), lambda b, r: (0, 0)),
            ],
            out_specs=pl.BlockSpec((bn, cout, tho, wo), lambda b, r: (b, 0, r, 0)),
        ),
        compiler_params=pltpu.CompilerParams(
            dimension_semantics=("parallel", "parallel"),
        ),
        cost_estimate=cost,
    )(x_nchw, w_noisy)

    return out


if __name__ == "__main__":
    key = jax.random.PRNGKey(0)
    k_x, k_w, k_nz = jax.random.split(key, 3)

    # Small shapes: batch=2, inplanes=4, planes=8, spatial=16x16
    N, Cin, H, W = 2, 4, 16, 16
    Cout = 8
    p_init = 4.0

    x = jax.random.normal(k_x, (N, Cin, H, W), dtype=jnp.float32)

    # Deterministic parameter init (kaiming-uniform-like bound, fixed PRNG).
    fan_in = Cin * 1 * 1
    bound = 1.0 / math.sqrt(fan_in)
    weight = jax.random.uniform(
        k_w, (Cout, Cin, 1, 1), minval=-bound, maxval=bound, dtype=jnp.float32
    )
    s = math.log(2 ** (1 - p_init) / (1 - 2 ** (1 - p_init)))
    weight_s = jnp.full((Cout, Cin, 1, 1), s, dtype=jnp.float32)

    # The torch.empty_like(weight).uniform_(-1, 1) noise sample.
    noise = jax.random.uniform(
        k_nz, (Cout, Cin, 1, 1), minval=-1.0, maxval=1.0, dtype=jnp.float32
    )

    out = shortcut_c_forward(x, weight, weight_s, noise)
    out = jax.block_until_ready(out)

    # Pure-JAX reference (same semantics as F.conv2d with the noisy weight).
    w_noisy_ref = weight + jax.nn.sigmoid(weight_s) * noise
    ref = jax.lax.conv_general_dilated(
        x, w_noisy_ref, window_strides=(2, 2), padding="VALID",
        dimension_numbers=("NCHW", "OIHW", "NCHW"),
    )
    assert out.shape == (N, Cout, H // 2, W // 2), out.shape
    assert jnp.allclose(out, ref, atol=1e-5, rtol=1e-5), float(
        jnp.max(jnp.abs(out - ref))
    )

    print("KERNEL_OK")
</pallas_src>

<mosaic_0001>
module attributes {stable_mosaic.version = 11 : i64} {
  func.func @kernel(%arg0: i32, %arg1: i32, %arg2: memref<1x4x16x16xf32, #tpu.memory_space<vmem>>, %arg3: memref<8x4xf32, #tpu.memory_space<vmem>>, %arg4: memref<1x8x8x8xf32, #tpu.memory_space<vmem>>) attributes {dimension_semantics = [#tpu.dimension_semantics<parallel>, #tpu.dimension_semantics<parallel>], iteration_bounds = array<i64: 2, 1>, scalar_prefetch = 0 : i64, scratch_operands = 0 : i64, tpu.core_type = #tpu.core_type<tc>, window_params = [{transform_indices = @transform_0, window_bounds = array<i64: 1, 4, 16, 16>}, {pipeline_mode = #tpu.pipeline_mode<synchronous>, transform_indices = @transform_1, window_bounds = array<i64: 8, 4>}, {transform_indices = @transform_2, window_bounds = array<i64: 1, 8, 8, 8>}]} {
    %0 = tpu.iota {dimensions = array<i32: 1>} : vector<8x16xi32>
    %1 = tpu.iota {dimensions = array<i32: 0>} : vector<8x16xi32>
    %c2_i32 = arith.constant 2 : i32
    %2 = vector.broadcast %c2_i32 : i32 to vector<8x16xi32>
    %3 = arith.muli %2, %1 : vector<8x16xi32>
    %4 = arith.cmpi eq, %0, %3 : vector<8x16xi32>
    %cst = arith.constant 1.000000e+00 : f32
    %cst_0 = arith.constant 0.000000e+00 : f32
    %5 = vector.broadcast %cst : f32 to vector<8x16xf32>
    %6 = vector.broadcast %cst_0 : f32 to vector<8x16xf32>
    %7 = arith.select %4, %5, %6 : vector<8x16xi1>, vector<8x16xf32>
    %8 = tpu.iota {dimensions = array<i32: 0>} : vector<16x8xi32>
    %9 = tpu.iota {dimensions = array<i32: 1>} : vector<16x8xi32>
    %c2_i32_1 = arith.constant 2 : i32
    %10 = vector.broadcast %c2_i32_1 : i32 to vector<16x8xi32>
    %11 = arith.muli %10, %9 : vector<16x8xi32>
    %12 = arith.cmpi eq, %8, %11 : vector<16x8xi32>
    %cst_2 = arith.constant 1.000000e+00 : f32
    %cst_3 = arith.constant 0.000000e+00 : f32
    %13 = vector.broadcast %cst_2 : f32 to vector<16x8xf32>
    %14 = vector.broadcast %cst_3 : f32 to vector<16x8xf32>
    %15 = arith.select %12, %13, %14 : vector<16x8xi1>, vector<16x8xf32>
    %c0 = arith.constant 0 : index
    %c0_4 = arith.constant 0 : index
    %16 = vector.load %arg3[%c0, %c0_4] : memref<8x4xf32, #tpu.memory_space<vmem>>, vector<8x4xf32>
    %c0_5 = arith.constant 0 : index
    %c0_6 = arith.constant 0 : index
    %c0_7 = arith.constant 0 : index
    %c0_8 = arith.constant 0 : index
    %17 = vector.load %arg2[%c0_5, %c0_6, %c0_7, %c0_8] : memref<1x4x16x16xf32, #tpu.memory_space<vmem>>, vector<1x1x16x16xf32>
    %18 = vector.shape_cast %17 : vector<1x1x16x16xf32> to vector<16x16xf32>
    %cst_9 = arith.constant dense<0.000000e+00> : vector<8x16xf32>
    %19 = tpu.matmul %7, %18, %cst_9 {dimension_numbers = #tpu.dot_dimension_numbers<[1], [0], [0], [1], [0, 0, 1, 1], [], []>} : vector<8x16xf32>, vector<16x16xf32>, vector<8x16xf32> -> vector<8x16xf32>
    %cst_10 = arith.constant dense<0.000000e+00> : vector<8x8xf32>
    %20 = tpu.matmul %19, %15, %cst_10 {dimension_numbers = #tpu.dot_dimension_numbers<[1], [0], [0], [1], [0, 0, 1, 1], [], []>} : vector<8x16xf32>, vector<16x8xf32>, vector<8x8xf32> -> vector<8x8xf32>
    %c0_11 = arith.constant 0 : index
    %c1 = arith.constant 1 : index
    %c0_12 = arith.constant 0 : index
    %c0_13 = arith.constant 0 : index
    %21 = vector.load %arg2[%c0_11, %c1, %c0_12, %c0_13] : memref<1x4x16x16xf32, #tpu.memory_space<vmem>>, vector<1x1x16x16xf32>
    %22 = vector.shape_cast %21 : vector<1x1x16x16xf32> to vector<16x16xf32>
    %cst_14 = arith.constant dense<0.000000e+00> : vector<8x16xf32>
    %23 = tpu.matmul %7, %22, %cst_14 {dimension_numbers = #tpu.dot_dimension_numbers<[1], [0], [0], [1], [0, 0, 1, 1], [], []>} : vector<8x16xf32>, vector<16x16xf32>, vector<8x16xf32> -> vector<8x16xf32>
    %cst_15 = arith.constant dense<0.000000e+00> : vector<8x8xf32>
    %24 = tpu.matmul %23, %15, %cst_15 {dimension_numbers = #tpu.dot_dimension_numbers<[1], [0], [0], [1], [0, 0, 1, 1], [], []>} : vector<8x16xf32>, vector<16x8xf32>, vector<8x8xf32> -> vector<8x8xf32>
    %c0_16 = arith.constant 0 : index
    %c2 = arith.constant 2 : index
    %c0_17 = arith.constant 0 : index
    %c0_18 = arith.constant 0 : index
    %25 = vector.load %arg2[%c0_16, %c2, %c0_17, %c0_18] : memref<1x4x16x16xf32, #tpu.memory_space<vmem>>, vector<1x1x16x16xf32>
    %26 = vector.shape_cast %25 : vector<1x1x16x16xf32> to vector<16x16xf32>
    %cst_19 = arith.constant dense<0.000000e+00> : vector<8x16xf32>
    %27 = tpu.matmul %7, %26, %cst_19 {dimension_numbers = #tpu.dot_dimension_numbers<[1], [0], [0], [1], [0, 0, 1, 1], [], []>} : vector<8x16xf32>, vector<16x16xf32>, vector<8x16xf32> -> vector<8x16xf32>
    %cst_20 = arith.constant dense<0.000000e+00> : vector<8x8xf32>
    %28 = tpu.matmul %27, %15, %cst_20 {dimension_numbers = #tpu.dot_dimension_numbers<[1], [0], [0], [1], [0, 0, 1, 1], [], []>} : vector<8x16xf32>, vector<16x8xf32>, vector<8x8xf32> -> vector<8x8xf32>
    %c0_21 = arith.constant 0 : index
    %c3 = arith.constant 3 : index
    %c0_22 = arith.constant 0 : index
    %c0_23 = arith.constant 0 : index
    %29 = vector.load %arg2[%c0_21, %c3, %c0_22, %c0_23] : memref<1x4x16x16xf32, #tpu.memory_space<vmem>>, vector<1x1x16x16xf32>
    %30 = vector.shape_cast %29 : vector<1x1x16x16xf32> to vector<16x16xf32>
    %cst_24 = arith.constant dense<0.000000e+00> : vector<8x16xf32>
    %31 = tpu.matmul %7, %30, %cst_24 {dimension_numbers = #tpu.dot_dimension_numbers<[1], [0], [0], [1], [0, 0, 1, 1], [], []>} : vector<8x16xf32>, vector<16x16xf32>, vector<8x16xf32> -> vector<8x16xf32>
    %cst_25 = arith.constant dense<0.000000e+00> : vector<8x8xf32>
    %32 = tpu.matmul %31, %15, %cst_25 {dimension_numbers = #tpu.dot_dimension_numbers<[1], [0], [0], [1], [0, 0, 1, 1], [], []>} : vector<8x16xf32>, vector<16x8xf32>, vector<8x8xf32> -> vector<8x8xf32>
    %33 = vector.extract_strided_slice %16 {offsets = [0, 0], sizes = [1, 1], strides = [1, 1]} : vector<8x4xf32> to vector<1x1xf32>
    %34 = vector.broadcast %33 : vector<1x1xf32> to vector<8x8xf32>
    %35 = arith.mulf %34, %20 : vector<8x8xf32>
    %36 = vector.extract_strided_slice %16 {offsets = [0, 1], sizes = [1, 1], strides = [1, 1]} : vector<8x4xf32> to vector<1x1xf32>
    %37 = vector.broadcast %36 : vector<1x1xf32> to vector<8x8xf32>
    %38 = arith.mulf %37, %24 : vector<8x8xf32>
    %39 = arith.addf %35, %38 : vector<8x8xf32>
    %40 = vector.extract_strided_slice %16 {offsets = [0, 2], sizes = [1, 1], strides = [1, 1]} : vector<8x4xf32> to vector<1x1xf32>
    %41 = vector.broadcast %40 : vector<1x1xf32> to vector<8x8xf32>
    %42 = arith.mulf %41, %28 : vector<8x8xf32>
    %43 = arith.addf %39, %42 : vector<8x8xf32>
    %44 = vector.extract_strided_slice %16 {offsets = [0, 3], sizes = [1, 1], strides = [1, 1]} : vector<8x4xf32> to vector<1x1xf32>
    %45 = vector.broadcast %44 : vector<1x1xf32> to vector<8x8xf32>
    %46 = arith.mulf %45, %32 : vector<8x8xf32>
    %47 = arith.addf %43, %46 : vector<8x8xf32>
    %c0_26 = arith.constant 0 : index
    %c0_27 = arith.constant 0 : index
    %c0_28 = arith.constant 0 : index
    %c0_29 = arith.constant 0 : index
    %48 = vector.load %arg4[%c0_26, %c0_27, %c0_28, %c0_29] : memref<1x8x8x8xf32, #tpu.memory_space<vmem>>, vector<1x1x8x8xf32>
    %49 = vector.shape_cast %48 : vector<1x1x8x8xf32> to vector<8x8xf32>
    %50 = vector.shape_cast %47 : vector<8x8xf32> to vector<1x1x8x8xf32>
    tpu.vector_store %arg4[%c0_26, %c0_27, %c0_28, %c0_29], %50 {strides = array<i32>} : memref<1x8x8x8xf32, #tpu.memory_space<vmem>>, vector<1x1x8x8xf32>,
    %51 = vector.extract_strided_slice %16 {offsets = [1, 0], sizes = [1, 1], strides = [1, 1]} : vector<8x4xf32> to vector<1x1xf32>
    %52 = vector.broadcast %51 : vector<1x1xf32> to vector<8x8xf32>
    %53 = arith.mulf %52, %20 : vector<8x8xf32>
    %54 = vector.extract_strided_slice %16 {offsets = [1, 1], sizes = [1, 1], strides = [1, 1]} : vector<8x4xf32> to vector<1x1xf32>
    %55 = vector.broadcast %54 : vector<1x1xf32> to vector<8x8xf32>
    %56 = arith.mulf %55, %24 : vector<8x8xf32>
    %57 = arith.addf %53, %56 : vector<8x8xf32>
    %58 = vector.extract_strided_slice %16 {offsets = [1, 2], sizes = [1, 1], strides = [1, 1]} : vector<8x4xf32> to vector<1x1xf32>
    %59 = vector.broadcast %58 : vector<1x1xf32> to vector<8x8xf32>
    %60 = arith.mulf %59, %28 : vector<8x8xf32>
    %61 = arith.addf %57, %60 : vector<8x8xf32>
    %62 = vector.extract_strided_slice %16 {offsets = [1, 3], sizes = [1, 1], strides = [1, 1]} : vector<8x4xf32> to vector<1x1xf32>
    %63 = vector.broadcast %62 : vector<1x1xf32> to vector<8x8xf32>
    %64 = arith.mulf %63, %32 : vector<8x8xf32>
    %65 = arith.addf %61, %64 : vector<8x8xf32>
    %c0_30 = arith.constant 0 : index
    %c1_31 = arith.constant 1 : index
    %c0_32 = arith.constant 0 : index
    %c0_33 = arith.constant 0 : index
    %66 = vector.load %arg4[%c0_30, %c1_31, %c0_32, %c0_33] : memref<1x8x8x8xf32, #tpu.memory_space<vmem>>, vector<1x1x8x8xf32>
    %67 = vector.shape_cast %66 : vector<1x1x8x8xf32> to vector<8x8xf32>
    %68 = vector.shape_cast %65 : vector<8x8xf32> to vector<1x1x8x8xf32>
    tpu.vector_store %arg4[%c0_30, %c1_31, %c0_32, %c0_33], %68 {strides = array<i32>} : memref<1x8x8x8xf32, #tpu.memory_space<vmem>>, vector<1x1x8x8xf32>,
    %69 = vector.extract_strided_slice %16 {offsets = [2, 0], sizes = [1, 1], strides = [1, 1]} : vector<8x4xf32> to vector<1x1xf32>
    %70 = vector.broadcast %69 : vector<1x1xf32> to vector<8x8xf32>
    %71 = arith.mulf %70, %20 : vector<8x8xf32>
    %72 = vector.extract_strided_slice %16 {offsets = [2, 1], sizes = [1, 1], strides = [1, 1]} : vector<8x4xf32> to vector<1x1xf32>
    %73 = vector.broadcast %72 : vector<1x1xf32> to vector<8x8xf32>
    %74 = arith.mulf %73, %24 : vector<8x8xf32>
    %75 = arith.addf %71, %74 : vector<8x8xf32>
    %76 = vector.extract_strided_slice %16 {offsets = [2, 2], sizes = [1, 1], strides = [1, 1]} : vector<8x4xf32> to vector<1x1xf32>
    %77 = vector.broadcast %76 : vector<1x1xf32> to vector<8x8xf32>
    %78 = arith.mulf %77, %28 : vector<8x8xf32>
    %79 = arith.addf %75, %78 : vector<8x8xf32>
    %80 = vector.extract_strided_slice %16 {offsets = [2, 3], sizes = [1, 1], strides = [1, 1]} : vector<8x4xf32> to vector<1x1xf32>
    %81 = vector.broadcast %80 : vector<1x1xf32> to vector<8x8xf32>
    %82 = arith.mulf %81, %32 : vector<8x8xf32>
    %83 = arith.addf %79, %82 : vector<8x8xf32>
    %c0_34 = arith.constant 0 : index
    %c2_35 = arith.constant 2 : index
    %c0_36 = arith.constant 0 : index
    %c0_37 = arith.constant 0 : index
    %84 = vector.load %arg4[%c0_34, %c2_35, %c0_36, %c0_37] : memref<1x8x8x8xf32, #tpu.memory_space<vmem>>, vector<1x1x8x8xf32>
    %85 = vector.shape_cast %84 : vector<1x1x8x8xf32> to vector<8x8xf32>
    %86 = vector.shape_cast %83 : vector<8x8xf32> to vector<1x1x8x8xf32>
    tpu.vector_store %arg4[%c0_34, %c2_35, %c0_36, %c0_37], %86 {strides = array<i32>} : memref<1x8x8x8xf32, #tpu.memory_space<vmem>>, vector<1x1x8x8xf32>,
    %87 = vector.extract_strided_slice %16 {offsets = [3, 0], sizes = [1, 1], strides = [1, 1]} : vector<8x4xf32> to vector<1x1xf32>
    %88 = vector.broadcast %87 : vector<1x1xf32> to vector<8x8xf32>
    %89 = arith.mulf %88, %20 : vector<8x8xf32>
    %90 = vector.extract_strided_slice %16 {offsets = [3, 1], sizes = [1, 1], strides = [1, 1]} : vector<8x4xf32> to vector<1x1xf32>
    %91 = vector.broadcast %90 : vector<1x1xf32> to vector<8x8xf32>
    %92 = arith.mulf %91, %24 : vector<8x8xf32>
    %93 = arith.addf %89, %92 : vector<8x8xf32>
    %94 = vector.extract_strided_slice %16 {offsets = [3, 2], sizes = [1, 1], strides = [1, 1]} : vector<8x4xf32> to vector<1x1xf32>
    %95 = vector.broadcast %94 : vector<1x1xf32> to vector<8x8xf32>
    %96 = arith.mulf %95, %28 : vector<8x8xf32>
    %97 = arith.addf %93, %96 : vector<8x8xf32>
    %98 = vector.extract_strided_slice %16 {offsets = [3, 3], sizes = [1, 1], strides = [1, 1]} : vector<8x4xf32> to vector<1x1xf32>
    %99 = vector.broadcast %98 : vector<1x1xf32> to vector<8x8xf32>
    %100 = arith.mulf %99, %32 : vector<8x8xf32>
    %101 = arith.addf %97, %100 : vector<8x8xf32>
    %c0_38 = arith.constant 0 : index
    %c3_39 = arith.constant 3 : index
    %c0_40 = arith.constant 0 : index
    %c0_41 = arith.constant 0 : index
    %102 = vector.load %arg4[%c0_38, %c3_39, %c0_40, %c0_41] : memref<1x8x8x8xf32, #tpu.memory_space<vmem>>, vector<1x1x8x8xf32>
    %103 = vector.shape_cast %102 : vector<1x1x8x8xf32> to vector<8x8xf32>
    %104 = vector.shape_cast %101 : vector<8x8xf32> to vector<1x1x8x8xf32>
    tpu.vector_store %arg4[%c0_38, %c3_39, %c0_40, %c0_41], %104 {strides = array<i32>} : memref<1x8x8x8xf32, #tpu.memory_space<vmem>>, vector<1x1x8x8xf32>,
    %105 = vector.extract_strided_slice %16 {offsets = [4, 0], sizes = [1, 1], strides = [1, 1]} : vector<8x4xf32> to vector<1x1xf32>
    %106 = vector.broadcast %105 : vector<1x1xf32> to vector<8x8xf32>
    %107 = arith.mulf %106, %20 : vector<8x8xf32>
    %108 = vector.extract_strided_slice %16 {offsets = [4, 1], sizes = [1, 1], strides = [1, 1]} : vector<8x4xf32> to vector<1x1xf32>
    %109 = vector.broadcast %108 : vector<1x1xf32> to vector<8x8xf32>
    %110 = arith.mulf %109, %24 : vector<8x8xf32>
    %111 = arith.addf %107, %110 : vector<8x8xf32>
    %112 = vector.extract_strided_slice %16 {offsets = [4, 2], sizes = [1, 1], strides = [1, 1]} : vector<8x4xf32> to vector<1x1xf32>
    %113 = vector.broadcast %112 : vector<1x1xf32> to vector<8x8xf32>
    %114 = arith.mulf %113, %28 : vector<8x8xf32>
    %115 = arith.addf %111, %114 : vector<8x8xf32>
    %116 = vector.extract_strided_slice %16 {offsets = [4, 3], sizes = [1, 1], strides = [1, 1]} : vector<8x4xf32> to vector<1x1xf32>
    %117 = vector.broadcast %116 : vector<1x1xf32> to vector<8x8xf32>
    %118 = arith.mulf %117, %32 : vector<8x8xf32>
    %119 = arith.addf %115, %118 : vector<8x8xf32>
    %c0_42 = arith.constant 0 : index
    %c4 = arith.constant 4 : index
    %c0_43 = arith.constant 0 : index
    %c0_44 = arith.constant 0 : index
    %120 = vector.load %arg4[%c0_42, %c4, %c0_43, %c0_44] : memref<1x8x8x8xf32, #tpu.memory_space<vmem>>, vector<1x1x8x8xf32>
    %121 = vector.shape_cast %120 : vector<1x1x8x8xf32> to vector<8x8xf32>
    %122 = vector.shape_cast %119 : vector<8x8xf32> to vector<1x1x8x8xf32>
    tpu.vector_store %arg4[%c0_42, %c4, %c0_43, %c0_44], %122 {strides = array<i32>} : memref<1x8x8x8xf32, #tpu.memory_space<vmem>>, vector<1x1x8x8xf32>,
    %123 = vector.extract_strided_slice %16 {offsets = [5, 0], sizes = [1, 1], strides = [1, 1]} : vector<8x4xf32> to vector<1x1xf32>
    %124 = vector.broadcast %123 : vector<1x1xf32> to vector<8x8xf32>
    %125 = arith.mulf %124, %20 : vector<8x8xf32>
    %126 = vector.extract_strided_slice %16 {offsets = [5, 1], sizes = [1, 1], strides = [1, 1]} : vector<8x4xf32> to vector<1x1xf32>
    %127 = vector.broadcast %126 : vector<1x1xf32> to vector<8x8xf32>
    %128 = arith.mulf %127, %24 : vector<8x8xf32>
    %129 = arith.addf %125, %128 : vector<8x8xf32>
    %130 = vector.extract_strided_slice %16 {offsets = [5, 2], sizes = [1, 1], strides = [1, 1]} : vector<8x4xf32> to vector<1x1xf32>
    %131 = vector.broadcast %130 : vector<1x1xf32> to vector<8x8xf32>
    %132 = arith.mulf %131, %28 : vector<8x8xf32>
    %133 = arith.addf %129, %132 : vector<8x8xf32>
    %134 = vector.extract_strided_slice %16 {offsets = [5, 3], sizes = [1, 1], strides = [1, 1]} : vector<8x4xf32> to vector<1x1xf32>
    %135 = vector.broadcast %134 : vector<1x1xf32> to vector<8x8xf32>
    %136 = arith.mulf %135, %32 : vector<8x8xf32>
    %137 = arith.addf %133, %136 : vector<8x8xf32>
    %c0_45 = arith.constant 0 : index
    %c5 = arith.constant 5 : index
    %c0_46 = arith.constant 0 : index
    %c0_47 = arith.constant 0 : index
    %138 = vector.load %arg4[%c0_45, %c5, %c0_46, %c0_47] : memref<1x8x8x8xf32, #tpu.memory_space<vmem>>, vector<1x1x8x8xf32>
    %139 = vector.shape_cast %138 : vector<1x1x8x8xf32> to vector<8x8xf32>
    %140 = vector.shape_cast %137 : vector<8x8xf32> to vector<1x1x8x8xf32>
    tpu.vector_store %arg4[%c0_45, %c5, %c0_46, %c0_47], %140 {strides = array<i32>} : memref<1x8x8x8xf32, #tpu.memory_space<vmem>>, vector<1x1x8x8xf32>,
    %141 = vector.extract_strided_slice %16 {offsets = [6, 0], sizes = [1, 1], strides = [1, 1]} : vector<8x4xf32> to vector<1x1xf32>
    %142 = vector.broadcast %141 : vector<1x1xf32> to vector<8x8xf32>
    %143 = arith.mulf %142, %20 : vector<8x8xf32>
    %144 = vector.extract_strided_slice %16 {offsets = [6, 1], sizes = [1, 1], strides = [1, 1]} : vector<8x4xf32> to vector<1x1xf32>
    %145 = vector.broadcast %144 : vector<1x1xf32> to vector<8x8xf32>
    %146 = arith.mulf %145, %24 : vector<8x8xf32>
    %147 = arith.addf %143, %146 : vector<8x8xf32>
    %148 = vector.extract_strided_slice %16 {offsets = [6, 2], sizes = [1, 1], strides = [1, 1]} : vector<8x4xf32> to vector<1x1xf32>
    %149 = vector.broadcast %148 : vector<1x1xf32> to vector<8x8xf32>
    %150 = arith.mulf %149, %28 : vector<8x8xf32>
    %151 = arith.addf %147, %150 : vector<8x8xf32>
    %152 = vector.extract_strided_slice %16 {offsets = [6, 3], sizes = [1, 1], strides = [1, 1]} : vector<8x4xf32> to vector<1x1xf32>
    %153 = vector.broadcast %152 : vector<1x1xf32> to vector<8x8xf32>
    %154 = arith.mulf %153, %32 : vector<8x8xf32>
    %155 = arith.addf %151, %154 : vector<8x8xf32>
    %c0_48 = arith.constant 0 : index
    %c6 = arith.constant 6 : index
    %c0_49 = arith.constant 0 : index
    %c0_50 = arith.constant 0 : index
    %156 = vector.load %arg4[%c0_48, %c6, %c0_49, %c0_50] : memref<1x8x8x8xf32, #tpu.memory_space<vmem>>, vector<1x1x8x8xf32>
    %157 = vector.shape_cast %156 : vector<1x1x8x8xf32> to vector<8x8xf32>
    %158 = vector.shape_cast %155 : vector<8x8xf32> to vector<1x1x8x8xf32>
    tpu.vector_store %arg4[%c0_48, %c6, %c0_49, %c0_50], %158 {strides = array<i32>} : memref<1x8x8x8xf32, #tpu.memory_space<vmem>>, vector<1x1x8x8xf32>,
    %159 = vector.extract_strided_slice %16 {offsets = [7, 0], sizes = [1, 1], strides = [1, 1]} : vector<8x4xf32> to vector<1x1xf32>
    %160 = vector.broadcast %159 : vector<1x1xf32> to vector<8x8xf32>
    %161 = arith.mulf %160, %20 : vector<8x8xf32>
    %162 = vector.extract_strided_slice %16 {offsets = [7, 1], sizes = [1, 1], strides = [1, 1]} : vector<8x4xf32> to vector<1x1xf32>
    %163 = vector.broadcast %162 : vector<1x1xf32> to vector<8x8xf32>
    %164 = arith.mulf %163, %24 : vector<8x8xf32>
    %165 = arith.addf %161, %164 : vector<8x8xf32>
    %166 = vector.extract_strided_slice %16 {offsets = [7, 2], sizes = [1, 1], strides = [1, 1]} : vector<8x4xf32> to vector<1x1xf32>
    %167 = vector.broadcast %166 : vector<1x1xf32> to vector<8x8xf32>
    %168 = arith.mulf %167, %28 : vector<8x8xf32>
    %169 = arith.addf %165, %168 : vector<8x8xf32>
    %170 = vector.extract_strided_slice %16 {offsets = [7, 3], sizes = [1, 1], strides = [1, 1]} : vector<8x4xf32> to vector<1x1xf32>
    %171 = vector.broadcast %170 : vector<1x1xf32> to vector<8x8xf32>
    %172 = arith.mulf %171, %32 : vector<8x8xf32>
    %173 = arith.addf %169, %172 : vector<8x8xf32>
    %c0_51 = arith.constant 0 : index
    %c7 = arith.constant 7 : index
    %c0_52 = arith.constant 0 : index
    %c0_53 = arith.constant 0 : index
    %174 = vector.load %arg4[%c0_51, %c7, %c0_52, %c0_53] : memref<1x8x8x8xf32, #tpu.memory_space<vmem>>, vector<1x1x8x8xf32>
    %175 = vector.shape_cast %174 : vector<1x1x8x8xf32> to vector<8x8xf32>
    %176 = vector.shape_cast %173 : vector<8x8xf32> to vector<1x1x8x8xf32>
    tpu.vector_store %arg4[%c0_51, %c7, %c0_52, %c0_53], %176 {strides = array<i32>} : memref<1x8x8x8xf32, #tpu.memory_space<vmem>>, vector<1x1x8x8xf32>,
    return
  }
  func.func @transform_0(%arg0: i32, %arg1: i32) -> (i32, i32, i32, i32) {
    %c0_i32 = arith.constant 0 : i32
    %c0_i32_0 = arith.constant 0 : i32
    %c0_i32_1 = arith.constant 0 : i32
    return %arg0, %c0_i32, %arg1, %c0_i32_0 : i32, i32, i32, i32
  }
  func.func @transform_1(%arg0: i32, %arg1: i32) -> (i32, i32) {
    %c0_i32 = arith.constant 0 : i32
    %c0_i32_0 = arith.constant 0 : i32
    %c0_i32_1 = arith.constant 0 : i32
    return %c0_i32, %c0_i32_0 : i32, i32
  }
  func.func @transform_2(%arg0: i32, %arg1: i32) -> (i32, i32, i32, i32) {
    %c0_i32 = arith.constant 0 : i32
    %c0_i32_0 = arith.constant 0 : i32
    %c0_i32_1 = arith.constant 0 : i32
    return %arg0, %c0_i32, %arg1, %c0_i32_0 : i32, i32, i32, i32
  }
}

</mosaic_0001>

<llo_original>
// kernel: tpu_custom_call.1
$region0: #{tpu_custom_call.1}
  #allocation0 [shape = 'u32[]', space=smem, size = 0x4, offset = 0x4, fixed_abs, tag = 'smem constant byte address 0x4 - core index']
  #allocation1 [shape = 'u32[144,128]{1,0:T(1,128)}', space=vmem, size = 0x12000, scoped, tag = 'internal scratch']
  %s0 = inlined_call_operand.hbm [shape: f32[2,4,16,16], index: 0, kind: input, shape index: {}]
  %s1 = inlined_call_operand.vmem [shape: f32[8,4], index: 1, kind: input, shape index: {}]
  %s2 = inlined_call_operand.hbm [shape: f32[2,8,8,8], index: 2, kind: output, shape index: {}]
  %s3 = sld [smem:[#allocation0]]
  $region45: #{tpu_custom_call.1} parent=0
    _
  %s5 = ssub.s32 1, %s3
  %s6 = scalar_select 0, %s5, %s3
  $region1: #{tpu_custom_call.1} parent=0
    #allocation2 [shape = 'u8[65536]{0}', space=vmem, size = 0x10000, scoped, tag = 'input window, operand 0']
    #allocation3 [shape = 's32[2]{0}', space=sflag, size = 0x8, scoped, tag = 'scoped memory for tpu_custom_call.1']
    #allocation4 [shape = 's32[2]{0}', space=sflag, size = 0x8, scoped, tag = 'scoped memory for tpu_custom_call.1']
    #allocation5 [shape = 'u8[65536]{0}', space=vmem, size = 0x10000, scoped, tag = 'output window, operand 0']
    %7 = vsyncpa [#allocation3], 0
    %s8 = scalar_lea.sflag [#allocation3], 1
    %9 = vsyncpa %s8, 0
    %10 = vsyncpa [#allocation4], 0
    %s11 = scalar_lea.sflag [#allocation4], 1
    %12 = vsyncpa %s11, 0
    loop: start=0, step=1, limit=4
    $region2: #{tpu_custom_call.1} parent=1 // loop_pre_header
      _
    $region3: #{tpu_custom_call.1} parent=1 // loop_header
      %s14 = sphi 0, %s18
      %p15 = scmp.ge.s32.totalorder %s14, 4
      %s21 = sphi 0, %s33
      %s22 = sphi 0, %s29
      %s23 = sphi 0, %s21
      %s24 = sphi 0, %s22
      %s25 = sphi 0, %s23
      %s26 = sphi 0, %s24
      %s38 = sphi 0, %s40
      %s41 = sphi 0, %s38
      %s42 = sphi 0, %s41
      %s58 = sphi 0, %s42
      %s62 = sphi 0, %s62
      %s64 = sphi 0, %s62
      %s65 = sphi 0, %s64
      %s79 = sphi 0, %s65
      %s87 = sphi 0, %s89
      %s90 = sphi 0, %s87
      %s91 = sphi 0, %s90
      %s107 = sphi 0, %s91
    $region4: #{tpu_custom_call.1} parent=1 // loop_header_branch
      %17 = sbr.rel (%p15) target = $region8
    $region5: #{tpu_custom_call.1} parent=1 // loop_body
      %s19 = ssub.s32 %s14, 1
      %s20 = ssub.s32 %s14, 2
      %s27 = sadd.s32 1, %s22
      %p28 = scmp.ge.s32.totalorder %s27, 1
      %s29 = scalar_select %p28, 0, %s27
      %s30 = sadd.s32 1, %s21
      %s31 = scalar_select %p28, %s30, %s21
      %p32 = scmp.ge.s32.totalorder %s31, 2
      %s33 = scalar_select %p32, 0, %s31
      %s34 = ssub.s32 %s21, %s33
      %s35 = ssub.s32 %s22, %s29
      %s36 = sor.u32 %s34, %s35
      %p37 = scmp.eq.s32.totalorder %s36, 0
      %s39 = sadd.s32 %s38, 1
      %s40 = scalar_select %p37, %s38, %s39
      %p43 = pneg %p37
      %p44 = scmp.eq.s32.totalorder %s14, 1
      %p45 = por %p43, %p44
      %p46 = scmp.ne.s32.totalorder %s38, %s41
      %p47 = scmp.eq.s32.totalorder %s14, 0
      %p48 = por %p46, %p47
      %p49 = scmp.ne.s32.totalorder %s38, %s41
      %p50 = scmp.eq.s32.totalorder %s19, 1
      %p51 = por %p49, %p50
      %p52 = scmp.ne.s32.totalorder %s41, %s42
      %p53 = scmp.eq.s32.totalorder %s19, 0
      %p54 = por %p52, %p53
      %p55 = scmp.ne.s32.totalorder %s41, %s42
      %p56 = scmp.eq.s32.totalorder %s20, 1
      %p57 = por %p55, %p56
      %p59 = scmp.ne.s32.totalorder %s42, %s58
      %p60 = scmp.eq.s32.totalorder %s20, 0
      %p61 = por %p59, %p60
      %s63 = sadd.s32 %s62, 1
      %p66 = scmp.eq.s32.totalorder %s14, 1
      %p67 = scmp.ne.s32.totalorder %s62, %s64
      %p68 = scmp.eq.s32.totalorder %s14, 0
      %p69 = por %p67, %p68
      %p70 = scmp.ne.s32.totalorder %s62, %s64
      %p71 = scmp.eq.s32.totalorder %s19, 1
      %p72 = por %p70, %p71
      %p73 = scmp.ne.s32.totalorder %s64, %s65
      %p74 = scmp.eq.s32.totalorder %s19, 0
      %p75 = por %p73, %p74
      %p76 = scmp.ne.s32.totalorder %s64, %s65
      %p77 = scmp.eq.s32.totalorder %s20, 1
      %p78 = por %p76, %p77
      %p80 = scmp.ne.s32.totalorder %s65, %s79
      %p81 = scmp.eq.s32.totalorder %s20, 0
      %p82 = por %p80, %p81
      %s83 = ssub.s32 %s21, %s33
      %s84 = ssub.s32 %s22, %s29
      %s85 = sor.u32 %s83, %s84
      %p86 = scmp.eq.s32.totalorder %s85, 0
      %s88 = sadd.s32 %s87, 1
      %s89 = scalar_select %p86, %s87, %s88
      %p92 = pneg %p86
      %p93 = scmp.eq.s32.totalorder %s14, 1
      %p94 = por %p92, %p93
      %p95 = scmp.ne.s32.totalorder %s87, %s90
      %p96 = scmp.eq.s32.totalorder %s14, 0
      %p97 = por %p95, %p96
      %p98 = scmp.ne.s32.totalorder %s87, %s90
      %p99 = scmp.eq.s32.totalorder %s19, 1
      %p100 = por %p98, %p99
      %p101 = scmp.ne.s32.totalorder %s90, %s91
      %p102 = scmp.eq.s32.totalorder %s19, 0
      %p103 = por %p101, %p102
      %p104 = scmp.ne.s32.totalorder %s90, %s91
      %p105 = scmp.eq.s32.totalorder %s20, 1
      %p106 = por %p104, %p105
      %p108 = scmp.ne.s32.totalorder %s91, %s107
      %p109 = scmp.eq.s32.totalorder %s20, 0
      %p110 = por %p108, %p109
      %p111 = scmp.le.s32.totalorder 1, %s14
      %p112 = scmp.lt.s32.totalorder %s14, 3
      %p113 = pnand %p111, %p112
      %p114 = pneg %p113
      // Predicated region
      $region9: #{tpu_custom_call.1} parent=5 // pred_check
        _
      $region10: #{tpu_custom_call.1} parent=5 // pred_check_branch
        %116 = sbr.rel (%p113) target = $region12
      $region11: #{tpu_custom_call.1} parent=5 // pred_region
        %s117 = ssub.s32 %s14, 1
        // Predicated region
        $region13: #{tpu_custom_call.1} parent=11 // pred_check
          %p118 = pneg %p75
        $region14: #{tpu_custom_call.1} parent=11 // pred_check_branch
          %120 = sbr.rel (%p118) target = $region16
        $region15: #{tpu_custom_call.1} parent=11 // pred_region
          _
        $region16: #{tpu_custom_call.1} parent=11 // pred_fallthru
          _
      $region12: #{tpu_custom_call.1} parent=5 // pred_fallthru
        _
      %p121 = scmp.lt.s32.totalorder %s14, 2
      // Predicated region
      $region17: #{tpu_custom_call.1} parent=5 // pred_check
        %p122 = pneg %p121
      $region18: #{tpu_custom_call.1} parent=5 // pred_check_branch
        %124 = sbr.rel (%p122) target = $region20
      $region19: #{tpu_custom_call.1} parent=5 // pred_region
        // Predicated region
        $region21: #{tpu_custom_call.1} parent=19 // pred_check
          %p125 = pneg %p48
        $region22: #{tpu_custom_call.1} parent=19 // pred_check_branch
          %127 = sbr.rel (%p125) target = $region24
        $region23: #{tpu_custom_call.1} parent=19 // pred_region
          %s128 = sand.u32 %s38, 1
          %s129 = scalar_lea.sflag [#allocation3], %s128
          %s130 = sand.u32 %s38, 1
          %s131 = smul.addr %s130, 64
          %s132 = scalar_lea.vmem [#allocation2], %s131
          %s133 = smul.u32 2, %s22
          %s135 = ssub.s32 1024, 1024
          %136 = vsyncadd %s129, %s135
          %s137 = smul.addr %s21, 8
          %s138 = sadd.s32 %s133, %s137
          %s139 = smul.addr %s138, 128
          %s140 = scalar_lea.hbm %s0, %s139
          %s141 = sshll.u32 %s132, 4
          %s142 = int_to_ptr.vmem [resolvable:$true] %s141
          %147 = dma.hbm_to_vmem [thread:$0]  %s140, 1024, %s142, %s129, 128, 128, 8
        $region24: #{tpu_custom_call.1} parent=19 // pred_fallthru
          _
      $region20: #{tpu_custom_call.1} parent=5 // pred_fallthru
        _
      %p148 = scmp.le.s32.totalorder 1, %s14
      %p149 = scmp.lt.s32.totalorder %s14, 3
      %p150 = pnand %p148, %p149
      %p151 = pneg %p150
      // Predicated region
      $region25: #{tpu_custom_call.1} parent=5 // pred_check
        _
      $region26: #{tpu_custom_call.1} parent=5 // pred_check_branch
        %153 = sbr.rel (%p150) target = $region28
      $region27: #{tpu_custom_call.1} parent=5 // pred_region
        %s154 = ssub.s32 %s14, 1
        %s155 = sand.u32 %s41, 1
        %s156 = scalar_lea.sflag [#allocation3], %s155
        %s157 = sand.u32 %s41, 1
        %s158 = smul.addr %s157, 64
        %s159 = scalar_lea.vmem [#allocation2], %s158
        // Predicated region
        $region29: #{tpu_custom_call.1} parent=27 // pred_check
          %p160 = pneg %p54
        $region30: #{tpu_custom_call.1} parent=27 // pred_check_branch
          %162 = sbr.rel (%p160) target = $region32
        $region31: #{tpu_custom_call.1} parent=27 // pred_region
          %163 = dma.done %s156, 1024
        $region32: #{tpu_custom_call.1} parent=27 // pred_fallthru
          _
        %s164 = sand.u32 %s41, 1
        %s165 = scalar_lea.sflag [#allocation3], %s164
        %s166 = sand.u32 %s41, 1
        %s167 = smul.addr %s166, 64
        %s168 = scalar_lea.vmem [#allocation2], %s167
        %p169 = pneg %p54
        %p170 = pneg %p51
        %p171 = pneg %p75
        %p172 = pneg %p72
        %p173 = pneg %p103
        %p174 = pneg %p100
        %s175 = sand.u32 %s90, 1
        %s176 = scalar_lea.sflag [#allocation4], %s175
        %s177 = sand.u32 %s90, 1
        %s178 = smul.addr %s177, 64
        %s179 = scalar_lea.vmem [#allocation5], %s178
        %s180 = smul.u32 2, %s24
        %v181 = vlaneseq
        %v182 = vand.u32 %v181, 127
        %v183 = vlaneseq
        %v184 = vshrl.u32 %v183, 7
        %v185 = vmul.u32 %v184, 2
        %vm186 = vcmp.eq.s32.totalorder %v182, %v185
        %v187 = vsel %vm186, 1.0, 0.0
        %v188 = vadd.s32 %v184, 8
        %v189 = vmul.u32 %v182, 2
        %vm190 = vcmp.eq.s32.totalorder %v184, %v189
        %vm191 = vcmp.eq.s32.totalorder %v188, %v189
        %v192 = vsel %vm190, 1.0, 0.0
        %v193 = vsel %vm191, 1.0, 0.0
        %v194 = vld [vmem:[%s1] sm:$0xff]
        %v195 = vld [vmem:[%s159] sm:$0xff]
        %v196 = vld [vmem:[%s159 + $0x8] sm:$0xff]
        %vm197 = vcmask 130048
        %v199 = vsel %vm197, %v187, 0
        %201 = vmatprep.subr.mxu0 0.0
        %202 = vmatpush1.msra.mxu0 %v195
        %203 = vmatprep.subr.mxu0 0.0
        %204 = vmatpush1.msra.mxu0 %v196
        %205 = vmatprep.subr.mxu0 0.0
        %206 = vmatpush1.msra.mxu0 0.0
        %207 = vmatprep.subr.mxu0 0.0
        %208 = vmatpush1.msra.mxu0 0.0
        %209 = vmatprep.subr.mxu0 0.0
        %210 = vmatpush1.msra.mxu0 0.0
        %211 = vmatprep.subr.mxu0 0.0
        %212 = vmatpush1.msra.mxu0 0.0
        %213 = vmatprep.subr.mxu0 0.0
        %214 = vmatpush1.msra.mxu0 0.0
        %215 = vmatprep.subr.mxu0 0.0
        %216 = vmatpush1.msra.mxu0 0.0
        %217 = vmatprep.subr.mxu0 0.0
        %218 = vmatpush1.msra.mxu0 0.0
        %219 = vmatprep.subr.mxu0 0.0
        %220 = vmatpush1.msra.mxu0 0.0
        %221 = vmatprep.subr.mxu0 0.0
        %222 = vmatpush1.msra.mxu0 0.0
        %223 = vmatprep.subr.mxu0 0.0
        %224 = vmatpush1.msra.mxu0 0.0
        %225 = vmatprep.subr.mxu0 0.0
        %226 = vmatpush1.msra.mxu0 0.0
        %227 = vmatprep.subr.mxu0 0.0
        %228 = vmatpush1.msra.mxu0 0.0
        %229 = vmatprep.subr.mxu0 0.0
        %230 = vmatpush1.msra.mxu0 0.0
        %231 = vmatprep.subr.mxu0 0.0
        %232 = vmatpush1.msra.mxu0 0.0
        %233 = vmatprep.subr.mxu0 0.0
        %234 = vmatpush1.msra.mxu0 0.0
        %235 = vmatprep.subr.mxu0 0.0
        %236 = vmatpush1.msra.mxu0 0.0
        %237 = vmatprep.subr.mxu0 0.0
        %238 = vmatpush1.msra.mxu0 0.0
        %239 = vmatprep.subr.mxu0 0.0
        %240 = vmatpush1.msra.mxu0 0.0
        %241 = vmatprep.subr.mxu0 0.0
        %242 = vmatpush1.msra.mxu0 0.0
        %243 = vmatprep.subr.mxu0 0.0
        %244 = vmatpush1.msra.mxu0 0.0
        %245 = vmatprep.subr.mxu0 0.0
        %246 = vmatpush1.msra.mxu0 0.0
        %247 = vmatprep.subr.mxu0 0.0
        %248 = vmatpush1.msra.mxu0 0.0
        %249 = vmatprep.subr.mxu0 0.0
        %250 = vmatpush1.msra.mxu0 0.0
        %251 = vmatprep.subr.mxu0 0.0
        %252 = vmatpush1.msra.mxu0 0.0
        %253 = vmatprep.subr.mxu0 0.0
        %254 = vmatpush1.msra.mxu0 0.0
        %255 = vmatprep.subr.mxu0 0.0
        %256 = vmatpush1.msra.mxu0 0.0
        %257 = vmatprep.subr.mxu0 0.0
        %258 = vmatpush1.msra.mxu0 0.0
        %259 = vmatprep.subr.mxu0 0.0
        %260 = vmatpush1.msra.mxu0 0.0
        %261 = vmatprep.subr.mxu0 0.0
        %262 = vmatpush1.msra.mxu0 0.0
        %263 = vmatprep.subr.mxu0 0.0
        %264 = vmatpush1.msra.mxu0 0.0
        %265 = vmatprep.mubr.f32.mxu0 0.0
        %266 = vmatmul.mubr.f32.gmra.mrb[0].mxu0 %v199
        %v267 = vpop.f32.mrb[0].mxu0
        %v268 = vadd.f32 0.0, %v267
        %v269 = vpop.f32.mrb[0].mxu0
        %270 = vdwg.mxu0
        %v272 = vsel %vm197, %v268, 0
        %274 = vmatprep.subr.mxu0 0.0
        %275 = vmatpush1.msra.mxu0 %v192
        %276 = vmatprep.subr.mxu0 0.0
        %277 = vmatpush1.msra.mxu0 %v193
        %278 = vmatprep.subr.mxu0 0.0
        %279 = vmatpush1.msra.mxu0 0.0
        %280 = vmatprep.subr.mxu0 0.0
        %281 = vmatpush1.msra.mxu0 0.0
        %282 = vmatprep.subr.mxu0 0.0
        %283 = vmatpush1.msra.mxu0 0.0
        %284 = vmatprep.subr.mxu0 0.0
        %285 = vmatpush1.msra.mxu0 0.0
        %286 = vmatprep.subr.mxu0 0.0
        %287 = vmatpush1.msra.mxu0 0.0
        %288 = vmatprep.subr.mxu0 0.0
        %289 = vmatpush1.msra.mxu0 0.0
        %290 = vmatprep.subr.mxu0 0.0
        %291 = vmatpush1.msra.mxu0 0.0
        %292 = vmatprep.subr.mxu0 0.0
        %293 = vmatpush1.msra.mxu0 0.0
        %294 = vmatprep.subr.mxu0 0.0
        %295 = vmatpush1.msra.mxu0 0.0
        %296 = vmatprep.subr.mxu0 0.0
        %297 = vmatpush1.msra.mxu0 0.0
        %298 = vmatprep.subr.mxu0 0.0
        %299 = vmatpush1.msra.mxu0 0.0
        %300 = vmatprep.subr.mxu0 0.0
        %301 = vmatpush1.msra.mxu0 0.0
        %302 = vmatprep.subr.mxu0 0.0
        %303 = vmatpush1.msra.mxu0 0.0
        %304 = vmatprep.subr.mxu0 0.0
        %305 = vmatpush1.msra.mxu0 0.0
        %306 = vmatprep.subr.mxu0 0.0
        %307 = vmatpush1.msra.mxu0 0.0
        %308 = vmatprep.subr.mxu0 0.0
        %309 = vmatpush1.msra.mxu0 0.0
        %310 = vmatprep.subr.mxu0 0.0
        %311 = vmatpush1.msra.mxu0 0.0
        %312 = vmatprep.subr.mxu0 0.0
        %313 = vmatpush1.msra.mxu0 0.0
        %314 = vmatprep.subr.mxu0 0.0
        %315 = vmatpush1.msra.mxu0 0.0
        %316 = vmatprep.subr.mxu0 0.0
        %317 = vmatpush1.msra.mxu0 0.0
        %318 = vmatprep.subr.mxu0 0.0
        %319 = vmatpush1.msra.mxu0 0.0
        %320 = vmatprep.subr.mxu0 0.0
        %321 = vmatpush1.msra.mxu0 0.0
        %322 = vmatprep.subr.mxu0 0.0
        %323 = vmatpush1.msra.mxu0 0.0
        %324 = vmatprep.subr.mxu0 0.0
        %325 = vmatpush1.msra.mxu0 0.0
        %326 = vmatprep.subr.mxu0 0.0
        %327 = vmatpush1.msra.mxu0 0.0
        %328 = vmatprep.subr.mxu0 0.0
        %329 = vmatpush1.msra.mxu0 0.0
        %330 = vmatprep.subr.mxu0 0.0
        %331 = vmatpush1.msra.mxu0 0.0
        %332 = vmatprep.subr.mxu0 0.0
        %333 = vmatpush1.msra.mxu0 0.0
        %334 = vmatprep.subr.mxu0 0.0
        %335 = vmatpush1.msra.mxu0 0.0
        %336 = vmatprep.subr.mxu0 0.0
        %337 = vmatpush1.msra.mxu0 0.0
        %338 = vmatprep.mubr.f32.mxu0 0.0
        %339 = vmatmul.mubr.f32.gmra.mrb[0].mxu0 %v272
        %v340 = vpop.f32.mrb[0].mxu0
        %v341 = vadd.f32 0.0, %v340
        %v342 = vpop.f32.mrb[0].mxu0
        %343 = vdwg.mxu0
        %s344 = scalar_lea.vmem %s159, 16 [#allocation2]
        %v345 = vld [vmem:[%s344] sm:$0xff]
        %v346 = vld [vmem:[%s344 + $0x8] sm:$0xff]
        %347 = vmatprep.subr.mxu0 0.0
        %348 = vmatpush1.msra.mxu0 %v345
        %349 = vmatprep.subr.mxu0 0.0
        %350 = vmatpush1.msra.mxu0 %v346
        %351 = vmatprep.subr.mxu0 0.0
        %352 = vmatpush1.msra.mxu0 0.0
        %353 = vmatprep.subr.mxu0 0.0
        %354 = vmatpush1.msra.mxu0 0.0
        %355 = vmatprep.subr.mxu0 0.0
        %356 = vmatpush1.msra.mxu0 0.0
        %357 = vmatprep.subr.mxu0 0.0
        %358 = vmatpush1.msra.mxu0 0.0
        %359 = vmatprep.subr.mxu0 0.0
        %360 = vmatpush1.msra.mxu0 0.0
        %361 = vmatprep.subr.mxu0 0.0
        %362 = vmatpush1.msra.mxu0 0.0
        %363 = vmatprep.subr.mxu0 0.0
        %364 = vmatpush1.msra.mxu0 0.0
        %365 = vmatprep.subr.mxu0 0.0
        %366 = vmatpush1.msra.mxu0 0.0
        %367 = vmatprep.subr.mxu0 0.0
        %368 = vmatpush1.msra.mxu0 0.0
        %369 = vmatprep.subr.mxu0 0.0
        %370 = vmatpush1.msra.mxu0 0.0
        %371 = vmatprep.subr.mxu0 0.0
        %372 = vmatpush1.msra.mxu0 0.0
        %373 = vmatprep.subr.mxu0 0.0
        %374 = vmatpush1.msra.mxu0 0.0
        %375 = vmatprep.subr.mxu0 0.0
        %376 = vmatpush1.msra.mxu0 0.0
        %377 = vmatprep.subr.mxu0 0.0
        %378 = vmatpush1.msra.mxu0 0.0
        %379 = vmatprep.subr.mxu0 0.0
        %380 = vmatpush1.msra.mxu0 0.0
        %381 = vmatprep.subr.mxu0 0.0
        %382 = vmatpush1.msra.mxu0 0.0
        %383 = vmatprep.subr.mxu0 0.0
        %384 = vmatpush1.msra.mxu0 0.0
        %385 = vmatprep.subr.mxu0 0.0
        %386 = vmatpush1.msra.mxu0 0.0
        %387 = vmatprep.subr.mxu0 0.0
        %388 = vmatpush1.msra.mxu0 0.0
        %389 = vmatprep.subr.mxu0 0.0
        %390 = vmatpush1.msra.mxu0 0.0
        %391 = vmatprep.subr.mxu0 0.0
        %392 = vmatpush1.msra.mxu0 0.0
        %393 = vmatprep.subr.mxu0 0.0
        %394 = vmatpush1.msra.mxu0 0.0
        %395 = vmatprep.subr.mxu0 0.0
        %396 = vmatpush1.msra.mxu0 0.0
        %397 = vmatprep.subr.mxu0 0.0
        %398 = vmatpush1.msra.mxu0 0.0
        %399 = vmatprep.subr.mxu0 0.0
        %400 = vmatpush1.msra.mxu0 0.0
        %401 = vmatprep.subr.mxu0 0.0
        %402 = vmatpush1.msra.mxu0 0.0
        %403 = vmatprep.subr.mxu0 0.0
        %404 = vmatpush1.msra.mxu0 0.0
        %405 = vmatprep.subr.mxu0 0.0
        %406 = vmatpush1.msra.mxu0 0.0
        %407 = vmatprep.subr.mxu0 0.0
        %408 = vmatpush1.msra.mxu0 0.0
        %409 = vmatprep.subr.mxu0 0.0
        %410 = vmatpush1.msra.mxu0 0.0
        %411 = vmatprep.mubr.f32.mxu0 0.0
        %412 = vmatmul.mubr.f32.gmra.mrb[0].mxu0 %v199
        %v413 = vpop.f32.mrb[0].mxu0
        %v414 = vadd.f32 0.0, %v413
        %v415 = vpop.f32.mrb[0].mxu0
        %416 = vdwg.mxu0
        %v418 = vsel %vm197, %v414, 0
        %420 = vmatprep.subr.mxu0 0.0
        %421 = vmatpush1.msra.mxu0 %v192
        %422 = vmatprep.subr.mxu0 0.0
        %423 = vmatpush1.msra.mxu0 %v193
        %424 = vmatprep.subr.mxu0 0.0
        %425 = vmatpush1.msra.mxu0 0.0
        %426 = vmatprep.subr.mxu0 0.0
        %427 = vmatpush1.msra.mxu0 0.0
        %428 = vmatprep.subr.mxu0 0.0
        %429 = vmatpush1.msra.mxu0 0.0
        %430 = vmatprep.subr.mxu0 0.0
        %431 = vmatpush1.msra.mxu0 0.0
        %432 = vmatprep.subr.mxu0 0.0
        %433 = vmatpush1.msra.mxu0 0.0
        %434 = vmatprep.subr.mxu0 0.0
        %435 = vmatpush1.msra.mxu0 0.0
        %436 = vmatprep.subr.mxu0 0.0
        %437 = vmatpush1.msra.mxu0 0.0
        %438 = vmatprep.subr.mxu0 0.0
        %439 = vmatpush1.msra.mxu0 0.0
        %440 = vmatprep.subr.mxu0 0.0
        %441 = vmatpush1.msra.mxu0 0.0
        %442 = vmatprep.subr.mxu0 0.0
        %443 = vmatpush1.msra.mxu0 0.0
        %444 = vmatprep.subr.mxu0 0.0
        %445 = vmatpush1.msra.mxu0 0.0
        %446 = vmatprep.subr.mxu0 0.0
        %447 = vmatpush1.msra.mxu0 0.0
        %448 = vmatprep.subr.mxu0 0.0
        %449 = vmatpush1.msra.mxu0 0.0
        %450 = vmatprep.subr.mxu0 0.0
        %451 = vmatpush1.msra.mxu0 0.0
        %452 = vmatprep.subr.mxu0 0.0
        %453 = vmatpush1.msra.mxu0 0.0
        %454 = vmatprep.subr.mxu0 0.0
        %455 = vmatpush1.msra.mxu0 0.0
        %456 = vmatprep.subr.mxu0 0.0
        %457 = vmatpush1.msra.mxu0 0.0
        %458 = vmatprep.subr.mxu0 0.0
        %459 = vmatpush1.msra.mxu0 0.0
        %460 = vmatprep.subr.mxu0 0.0
        %461 = vmatpush1.msra.mxu0 0.0
        %462 = vmatprep.subr.mxu0 0.0
        %463 = vmatpush1.msra.mxu0 0.0
        %464 = vmatprep.subr.mxu0 0.0
        %465 = vmatpush1.msra.mxu0 0.0
        %466 = vmatprep.subr.mxu0 0.0
        %467 = vmatpush1.msra.mxu0 0.0
        %468 = vmatprep.subr.mxu0 0.0
        %469 = vmatpush1.msra.mxu0 0.0
        %470 = vmatprep.subr.mxu0 0.0
        %471 = vmatpush1.msra.mxu0 0.0
        %472 = vmatprep.subr.mxu0 0.0
        %473 = vmatpush1.msra.mxu0 0.0
        %474 = vmatprep.subr.mxu0 0.0
        %475 = vmatpush1.msra.mxu0 0.0
        %476 = vmatprep.subr.mxu0 0.0
        %477 = vmatpush1.msra.mxu0 0.0
        %478 = vmatprep.subr.mxu0 0.0
        %479 = vmatpush1.msra.mxu0 0.0
        %480 = vmatprep.subr.mxu0 0.0
        %481 = vmatpush1.msra.mxu0 0.0
        %482 = vmatprep.subr.mxu0 0.0
        %483 = vmatpush1.msra.mxu0 0.0
        %484 = vmatprep.mubr.f32.mxu0 0.0
        %485 = vmatmul.mubr.f32.gmra.mrb[0].mxu0 %v418
        %v486 = vpop.f32.mrb[0].mxu0
        %v487 = vadd.f32 0.0, %v486
        %v488 = vpop.f32.mrb[0].mxu0
        %489 = vdwg.mxu0
        %s490 = scalar_lea.vmem %s159, 32 [#allocation2]
        %v491 = vld [vmem:[%s490] sm:$0xff]
        %v492 = vld [vmem:[%s490 + $0x8] sm:$0xff]
        %493 = vmatprep.subr.mxu0 0.0
        %494 = vmatpush1.msra.mxu0 %v491
        %495 = vmatprep.subr.mxu0 0.0
        %496 = vmatpush1.msra.mxu0 %v492
        %497 = vmatprep.subr.mxu0 0.0
        %498 = vmatpush1.msra.mxu0 0.0
        %499 = vmatprep.subr.mxu0 0.0
        %500 = vmatpush1.msra.mxu0 0.0
        %501 = vmatprep.subr.mxu0 0.0
        %502 = vmatpush1.msra.mxu0 0.0
        %503 = vmatprep.subr.mxu0 0.0
        %504 = vmatpush1.msra.mxu0 0.0
        %505 = vmatprep.subr.mxu0 0.0
        %506 = vmatpush1.msra.mxu0 0.0
        %507 = vmatprep.subr.mxu0 0.0
        %508 = vmatpush1.msra.mxu0 0.0
        %509 = vmatprep.subr.mxu0 0.0
        %510 = vmatpush1.msra.mxu0 0.0
        %511 = vmatprep.subr.mxu0 0.0
        %512 = vmatpush1.msra.mxu0 0.0
        %513 = vmatprep.subr.mxu0 0.0
        %514 = vmatpush1.msra.mxu0 0.0
        %515 = vmatprep.subr.mxu0 0.0
        %516 = vmatpush1.msra.mxu0 0.0
        %517 = vmatprep.subr.mxu0 0.0
        %518 = vmatpush1.msra.mxu0 0.0
        %519 = vmatprep.subr.mxu0 0.0
        %520 = vmatpush1.msra.mxu0 0.0
        %521 = vmatprep.subr.mxu0 0.0
        %522 = vmatpush1.msra.mxu0 0.0
        %523 = vmatprep.subr.mxu0 0.0
        %524 = vmatpush1.msra.mxu0 0.0
        %525 = vmatprep.subr.mxu0 0.0
        %526 = vmatpush1.msra.mxu0 0.0
        %527 = vmatprep.subr.mxu0 0.0
        %528 = vmatpush1.msra.mxu0 0.0
        %529 = vmatprep.subr.mxu0 0.0
        %530 = vmatpush1.msra.mxu0 0.0
        %531 = vmatprep.subr.mxu0 0.0
        %532 = vmatpush1.msra.mxu0 0.0
        %533 = vmatprep.subr.mxu0 0.0
        %534 = vmatpush1.msra.mxu0 0.0
        %535 = vmatprep.subr.mxu0 0.0
        %536 = vmatpush1.msra.mxu0 0.0
        %537 = vmatprep.subr.mxu0 0.0
        %538 = vmatpush1.msra.mxu0 0.0
        %539 = vmatprep.subr.mxu0 0.0
        %540 = vmatpush1.msra.mxu0 0.0
        %541 = vmatprep.subr.mxu0 0.0
        %542 = vmatpush1.msra.mxu0 0.0
        %543 = vmatprep.subr.mxu0 0.0
        %544 = vmatpush1.msra.mxu0 0.0
        %545 = vmatprep.subr.mxu0 0.0
        %546 = vmatpush1.msra.mxu0 0.0
        %547 = vmatprep.subr.mxu0 0.0
        %548 = vmatpush1.msra.mxu0 0.0
        %549 = vmatprep.subr.mxu0 0.0
        %550 = vmatpush1.msra.mxu0 0.0
        %551 = vmatprep.subr.mxu0 0.0
        %552 = vmatpush1.msra.mxu0 0.0
        %553 = vmatprep.subr.mxu0 0.0
        %554 = vmatpush1.msra.mxu0 0.0
        %555 = vmatprep.subr.mxu0 0.0
        %556 = vmatpush1.msra.mxu0 0.0
        %557 = vmatprep.mubr.f32.mxu0 0.0
        %558 = vmatmul.mubr.f32.gmra.mrb[0].mxu0 %v199
        %v559 = vpop.f32.mrb[0].mxu0
        %v560 = vadd.f32 0.0, %v559
        %v561 = vpop.f32.mrb[0].mxu0
        %562 = vdwg.mxu0
        %v564 = vsel %vm197, %v560, 0
        %566 = vmatprep.subr.mxu0 0.0
        %567 = vmatpush1.msra.mxu0 %v192
        %568 = vmatprep.subr.mxu0 0.0
        %569 = vmatpush1.msra.mxu0 %v193
        %570 = vmatprep.subr.mxu0 0.0
        %571 = vmatpush1.msra.mxu0 0.0
        %572 = vmatprep.subr.mxu0 0.0
        %573 = vmatpush1.msra.mxu0 0.0
        %574 = vmatprep.subr.mxu0 0.0
        %575 = vmatpush1.msra.mxu0 0.0
        %576 = vmatprep.subr.mxu0 0.0
        %577 = vmatpush1.msra.mxu0 0.0
        %578 = vmatprep.subr.mxu0 0.0
        %579 = vmatpush1.msra.mxu0 0.0
        %580 = vmatprep.subr.mxu0 0.0
        %581 = vmatpush1.msra.mxu0 0.0
        %582 = vmatprep.subr.mxu0 0.0
        %583 = vmatpush1.msra.mxu0 0.0
        %584 = vmatprep.subr.mxu0 0.0
        %585 = vmatpush1.msra.mxu0 0.0
        %586 = vmatprep.subr.mxu0 0.0
        %587 = vmatpush1.msra.mxu0 0.0
        %588 = vmatprep.subr.mxu0 0.0
        %589 = vmatpush1.msra.mxu0 0.0
        %590 = vmatprep.subr.mxu0 0.0
        %591 = vmatpush1.msra.mxu0 0.0
        %592 = vmatprep.subr.mxu0 0.0
        %593 = vmatpush1.msra.mxu0 0.0
        %594 = vmatprep.subr.mxu0 0.0
        %595 = vmatpush1.msra.mxu0 0.0
        %596 = vmatprep.subr.mxu0 0.0
        %597 = vmatpush1.msra.mxu0 0.0
        %598 = vmatprep.subr.mxu0 0.0
        %599 = vmatpush1.msra.mxu0 0.0
        %600 = vmatprep.subr.mxu0 0.0
        %601 = vmatpush1.msra.mxu0 0.0
        %602 = vmatprep.subr.mxu0 0.0
        %603 = vmatpush1.msra.mxu0 0.0
        %604 = vmatprep.subr.mxu0 0.0
        %605 = vmatpush1.msra.mxu0 0.0
        %606 = vmatprep.subr.mxu0 0.0
        %607 = vmatpush1.msra.mxu0 0.0
        %608 = vmatprep.subr.mxu0 0.0
        %609 = vmatpush1.msra.mxu0 0.0
        %610 = vmatprep.subr.mxu0 0.0
        %611 = vmatpush1.msra.mxu0 0.0
        %612 = vmatprep.subr.mxu0 0.0
        %613 = vmatpush1.msra.mxu0 0.0
        %614 = vmatprep.subr.mxu0 0.0
        %615 = vmatpush1.msra.mxu0 0.0
        %616 = vmatprep.subr.mxu0 0.0
        %617 = vmatpush1.msra.mxu0 0.0
        %618 = vmatprep.subr.mxu0 0.0
        %619 = vmatpush1.msra.mxu0 0.0
        %620 = vmatprep.subr.mxu0 0.0
        %621 = vmatpush1.msra.mxu0 0.0
        %622 = vmatprep.subr.mxu0 0.0
        %623 = vmatpush1.msra.mxu0 0.0
        %624 = vmatprep.subr.mxu0 0.0
        %625 = vmatpush1.msra.mxu0 0.0
        %626 = vmatprep.subr.mxu0 0.0
        %627 = vmatpush1.msra.mxu0 0.0
        %628 = vmatprep.subr.mxu0 0.0
        %629 = vmatpush1.msra.mxu0 0.0
        %630 = vmatprep.mubr.f32.mxu0 0.0
        %631 = vmatmul.mubr.f32.gmra.mrb[0].mxu0 %v564
        %v632 = vpop.f32.mrb[0].mxu0
        %v633 = vadd.f32 0.0, %v632
        %v634 = vpop.f32.mrb[0].mxu0
        %635 = vdwg.mxu0
        %s636 = scalar_lea.vmem %s159, 48 [#allocation2]
        %v637 = vld [vmem:[%s636] sm:$0xff]
        %v638 = vld [vmem:[%s636 + $0x8] sm:$0xff]
        %639 = vmatprep.subr.mxu0 0.0
        %640 = vmatpush1.msra.mxu0 %v637
        %641 = vmatprep.subr.mxu0 0.0
        %642 = vmatpush1.msra.mxu0 %v638
        %643 = vmatprep.subr.mxu0 0.0
        %644 = vmatpush1.msra.mxu0 0.0
        %645 = vmatprep.subr.mxu0 0.0
        %646 = vmatpush1.msra.mxu0 0.0
        %647 = vmatprep.subr.mxu0 0.0
        %648 = vmatpush1.msra.mxu0 0.0
        %649 = vmatprep.subr.mxu0 0.0
        %650 = vmatpush1.msra.mxu0 0.0
        %651 = vmatprep.subr.mxu0 0.0
        %652 = vmatpush1.msra.mxu0 0.0
        %653 = vmatprep.subr.mxu0 0.0
        %654 = vmatpush1.msra.mxu0 0.0
        %655 = vmatprep.subr.mxu0 0.0
        %656 = vmatpush1.msra.mxu0 0.0
        %657 = vmatprep.subr.mxu0 0.0
        %658 = vmatpush1.msra.mxu0 0.0
        %659 = vmatprep.subr.mxu0 0.0
        %660 = vmatpush1.msra.mxu0 0.0
        %661 = vmatprep.subr.mxu0 0.0
        %662 = vmatpush1.msra.mxu0 0.0
        %663 = vmatprep.subr.mxu0 0.0
        %664 = vmatpush1.msra.mxu0 0.0
        %665 = vmatprep.subr.mxu0 0.0
        %666 = vmatpush1.msra.mxu0 0.0
        %667 = vmatprep.subr.mxu0 0.0
        %668 = vmatpush1.msra.mxu0 0.0
        %669 = vmatprep.subr.mxu0 0.0
        %670 = vmatpush1.msra.mxu0 0.0
        %671 = vmatprep.subr.mxu0 0.0
        %672 = vmatpush1.msra.mxu0 0.0
        %673 = vmatprep.subr.mxu0 0.0
        %674 = vmatpush1.msra.mxu0 0.0
        %675 = vmatprep.subr.mxu0 0.0
        %676 = vmatpush1.msra.mxu0 0.0
        %677 = vmatprep.subr.mxu0 0.0
        %678 = vmatpush1.msra.mxu0 0.0
        %679 = vmatprep.subr.mxu0 0.0
        %680 = vmatpush1.msra.mxu0 0.0
        %681 = vmatprep.subr.mxu0 0.0
        %682 = vmatpush1.msra.mxu0 0.0
        %683 = vmatprep.subr.mxu0 0.0
        %684 = vmatpush1.msra.mxu0 0.0
        %685 = vmatprep.subr.mxu0 0.0
        %686 = vmatpush1.msra.mxu0 0.0
        %687 = vmatprep.subr.mxu0 0.0
        %688 = vmatpush1.msra.mxu0 0.0
        %689 = vmatprep.subr.mxu0 0.0
        %690 = vmatpush1.msra.mxu0 0.0
        %691 = vmatprep.subr.mxu0 0.0
        %692 = vmatpush1.msra.mxu0 0.0
        %693 = vmatprep.subr.mxu0 0.0
        %694 = vmatpush1.msra.mxu0 0.0
        %695 = vmatprep.subr.mxu0 0.0
        %696 = vmatpush1.msra.mxu0 0.0
        %697 = vmatprep.subr.mxu0 0.0
        %698 = vmatpush1.msra.mxu0 0.0
        %699 = vmatprep.subr.mxu0 0.0
        %700 = vmatpush1.msra.mxu0 0.0
        %701 = vmatprep.subr.mxu0 0.0
        %702 = vmatpush1.msra.mxu0 0.0
        %703 = vmatprep.mubr.f32.mxu0 0.0
        %704 = vmatmul.mubr.f32.gmra.mrb[0].mxu0 %v199
        %v705 = vpop.f32.mrb[0].mxu0
        %v706 = vadd.f32 0.0, %v705
        %v707 = vpop.f32.mrb[0].mxu0
        %708 = vdwg.mxu0
        %v710 = vsel %vm197, %v706, 0
        %712 = vmatprep.subr.mxu0 0.0
        %713 = vmatpush1.msra.mxu0 %v192
        %714 = vmatprep.subr.mxu0 0.0
        %715 = vmatpush1.msra.mxu0 %v193
        %716 = vmatprep.subr.mxu0 0.0
        %717 = vmatpush1.msra.mxu0 0.0
        %718 = vmatprep.subr.mxu0 0.0
        %719 = vmatpush1.msra.mxu0 0.0
        %720 = vmatprep.subr.mxu0 0.0
        %721 = vmatpush1.msra.mxu0 0.0
        %722 = vmatprep.subr.mxu0 0.0
        %723 = vmatpush1.msra.mxu0 0.0
        %724 = vmatprep.subr.mxu0 0.0
        %725 = vmatpush1.msra.mxu0 0.0
        %726 = vmatprep.subr.mxu0 0.0
        %727 = vmatpush1.msra.mxu0 0.0
        %728 = vmatprep.subr.mxu0 0.0
        %729 = vmatpush1.msra.mxu0 0.0
        %730 = vmatprep.subr.mxu0 0.0
        %731 = vmatpush1.msra.mxu0 0.0
        %732 = vmatprep.subr.mxu0 0.0
        %733 = vmatpush1.msra.mxu0 0.0
        %734 = vmatprep.subr.mxu0 0.0
        %735 = vmatpush1.msra.mxu0 0.0
        %736 = vmatprep.subr.mxu0 0.0
        %737 = vmatpush1.msra.mxu0 0.0
        %738 = vmatprep.subr.mxu0 0.0
        %739 = vmatpush1.msra.mxu0 0.0
        %740 = vmatprep.subr.mxu0 0.0
        %741 = vmatpush1.msra.mxu0 0.0
        %742 = vmatprep.subr.mxu0 0.0
        %743 = vmatpush1.msra.mxu0 0.0
        %744 = vmatprep.subr.mxu0 0.0
        %745 = vmatpush1.msra.mxu0 0.0
        %746 = vmatprep.subr.mxu0 0.0
        %747 = vmatpush1.msra.mxu0 0.0
        %748 = vmatprep.subr.mxu0 0.0
        %749 = vmatpush1.msra.mxu0 0.0
        %750 = vmatprep.subr.mxu0 0.0
        %751 = vmatpush1.msra.mxu0 0.0
        %752 = vmatprep.subr.mxu0 0.0
        %753 = vmatpush1.msra.mxu0 0.0
        %754 = vmatprep.subr.mxu0 0.0
        %755 = vmatpush1.msra.mxu0 0.0
        %756 = vmatprep.subr.mxu0 0.0
        %757 = vmatpush1.msra.mxu0 0.0
        %758 = vmatprep.subr.mxu0 0.0
        %759 = vmatpush1.msra.mxu0 0.0
        %760 = vmatprep.subr.mxu0 0.0
        %761 = vmatpush1.msra.mxu0 0.0
        %762 = vmatprep.subr.mxu0 0.0
        %763 = vmatpush1.msra.mxu0 0.0
        %764 = vmatprep.subr.mxu0 0.0
        %765 = vmatpush1.msra.mxu0 0.0
        %766 = vmatprep.subr.mxu0 0.0
        %767 = vmatpush1.msra.mxu0 0.0
        %768 = vmatprep.subr.mxu0 0.0
        %769 = vmatpush1.msra.mxu0 0.0
        %770 = vmatprep.subr.mxu0 0.0
        %771 = vmatpush1.msra.mxu0 0.0
        %772 = vmatprep.subr.mxu0 0.0
        %773 = vmatpush1.msra.mxu0 0.0
        %774 = vmatprep.subr.mxu0 0.0
        %775 = vmatpush1.msra.mxu0 0.0
        %776 = vmatprep.mubr.f32.mxu0 0.0
        %777 = vmatmul.mubr.f32.gmra.mrb[0].mxu0 %v710
        %v778 = vpop.f32.mrb[0].mxu0
        %v779 = vadd.f32 0.0, %v778
        %v780 = vpop.f32.mrb[0].mxu0
        %781 = vdwg.mxu0
        %s783 = vtos %v194
        %v784 = vstv %s783
        %v786 = vmul.f32 %v784, %v341
        %787 = vrot.lane.b32.xlu0 %v194, 127
        %v788 = vpop.permute.xlu0 %787
        %s789 = vtos %v788
        %v790 = vstv %s789
        %v792 = vmul.f32 %v790, %v487
        %v793 = vadd.f32 %v786, %v792
        %794 = vrot.lane.b32.xlu0 %v194, 126
        %v795 = vpop.permute.xlu0 %794
        %s796 = vtos %v795
        %v797 = vstv %s796
        %v799 = vmul.f32 %v797, %v633
        %v800 = vadd.f32 %v793, %v799
        %801 = vrot.lane.b32.xlu0 %v194, 125
        %v802 = vpop.permute.xlu0 %801
        %s803 = vtos %v802
        %v804 = vstv %s803
        %v806 = vmul.f32 %v804, %v779
        %v807 = vadd.f32 %v800, %v806
        %vm808 = vcmask 64512
        %809 = vst.msk [vmem:[%s179] sm:$0xff] %vm808, %v807
        %v810 = vrot.slane %v194, 1
        %s811 = vtos %v810
        %v812 = vstv %s811
        %v814 = vmul.f32 %v812, %v341
        %815 = vrot.lane.b32.xlu0 %v810, 127
        %v816 = vpop.permute.xlu0 %815
        %s817 = vtos %v816
        %v818 = vstv %s817
        %v820 = vmul.f32 %v818, %v487
        %v821 = vadd.f32 %v814, %v820
        %822 = vrot.lane.b32.xlu0 %v810, 126
        %v823 = vpop.permute.xlu0 %822
        %s824 = vtos %v823
        %v825 = vstv %s824
        %v827 = vmul.f32 %v825, %v633
        %v828 = vadd.f32 %v821, %v827
        %829 = vrot.lane.b32.xlu0 %v810, 125
        %v830 = vpop.permute.xlu0 %829
        %s831 = vtos %v830
        %v832 = vstv %s831
        %v834 = vmul.f32 %v832, %v779
        %v835 = vadd.f32 %v828, %v834
        %s836 = scalar_lea.vmem %s179, 8 [#allocation5]
        %837 = vst.msk [vmem:[%s836] sm:$0xff] %vm808, %v835
        %v838 = vrot.slane %v194, 2
        %s839 = vtos %v838
        %v840 = vstv %s839
        %v842 = vmul.f32 %v840, %v341
        %843 = vrot.lane.b32.xlu0 %v838, 127
        %v844 = vpop.permute.xlu0 %843
        %s845 = vtos %v844
        %v846 = vstv %s845
        %v848 = vmul.f32 %v846, %v487
        %v849 = vadd.f32 %v842, %v848
        %850 = vrot.lane.b32.xlu0 %v838, 126
        %v851 = vpop.permute.xlu0 %850
        %s852 = vtos %v851
        %v853 = vstv %s852
        %v855 = vmul.f32 %v853, %v633
        %v856 = vadd.f32 %v849, %v855
        %857 = vrot.lane.b32.xlu0 %v838, 125
        %v858 = vpop.permute.xlu0 %857
        %s859 = vtos %v858
        %v860 = vstv %s859
        %v862 = vmul.f32 %v860, %v779
        %v863 = vadd.f32 %v856, %v862
        %s864 = scalar_lea.vmem %s179, 16 [#allocation5]
        %865 = vst.msk [vmem:[%s864] sm:$0xff] %vm808, %v863
        %v866 = vrot.slane %v194, 3
        %s867 = vtos %v866
        %v868 = vstv %s867
        %v870 = vmul.f32 %v868, %v341
        %871 = vrot.lane.b32.xlu0 %v866, 127
        %v872 = vpop.permute.xlu0 %871
        %s873 = vtos %v872
        %v874 = vstv %s873
        %v876 = vmul.f32 %v874, %v487
        %v877 = vadd.f32 %v870, %v876
        %878 = vrot.lane.b32.xlu0 %v866, 126
        %v879 = vpop.permute.xlu0 %878
        %s880 = vtos %v879
        %v881 = vstv %s880
        %v883 = vmul.f32 %v881, %v633
        %v884 = vadd.f32 %v877, %v883
        %885 = vrot.lane.b32.xlu0 %v866, 125
        %v886 = vpop.permute.xlu0 %885
        %s887 = vtos %v886
        %v888 = vstv %s887
        %v890 = vmul.f32 %v888, %v779
        %v891 = vadd.f32 %v884, %v890
        %s892 = scalar_lea.vmem %s179, 24 [#allocation5]
        %893 = vst.msk [vmem:[%s892] sm:$0xff] %vm808, %v891
        %v894 = vrot.slane %v194, 4
        %s895 = vtos %v894
        %v896 = vstv %s895
        %v898 = vmul.f32 %v896, %v341
        %899 = vrot.lane.b32.xlu0 %v894, 127
        %v900 = vpop.permute.xlu0 %899
        %s901 = vtos %v900
        %v902 = vstv %s901
        %v904 = vmul.f32 %v902, %v487
        %v905 = vadd.f32 %v898, %v904
        %906 = vrot.lane.b32.xlu0 %v894, 126
        %v907 = vpop.permute.xlu0 %906
        %s908 = vtos %v907
        %v909 = vstv %s908
        %v911 = vmul.f32 %v909, %v633
        %v912 = vadd.f32 %v905, %v911
        %913 = vrot.lane.b32.xlu0 %v894, 125
        %v914 = vpop.permute.xlu0 %913
        %s915 = vtos %v914
        %v916 = vstv %s915
        %v918 = vmul.f32 %v916, %v779
        %v919 = vadd.f32 %v912, %v918
        %s920 = scalar_lea.vmem %s179, 32 [#allocation5]
        %921 = vst.msk [vmem:[%s920] sm:$0xff] %vm808, %v919
        %v922 = vrot.slane %v194, 5
        %s923 = vtos %v922
        %v924 = vstv %s923
        %v926 = vmul.f32 %v924, %v341
        %927 = vrot.lane.b32.xlu0 %v922, 127
        %v928 = vpop.permute.xlu0 %927
        %s929 = vtos %v928
        %v930 = vstv %s929
        %v932 = vmul.f32 %v930, %v487
        %v933 = vadd.f32 %v926, %v932
        %934 = vrot.lane.b32.xlu0 %v922, 126
        %v935 = vpop.permute.xlu0 %934
        %s936 = vtos %v935
        %v937 = vstv %s936
        %v939 = vmul.f32 %v937, %v633
        %v940 = vadd.f32 %v933, %v939
        %941 = vrot.lane.b32.xlu0 %v922, 125
        %v942 = vpop.permute.xlu0 %941
        %s943 = vtos %v942
        %v944 = vstv %s943
        %v946 = vmul.f32 %v944, %v779
        %v947 = vadd.f32 %v940, %v946
        %s948 = scalar_lea.vmem %s179, 40 [#allocation5]
        %949 = vst.msk [vmem:[%s948] sm:$0xff] %vm808, %v947
        %v950 = vrot.slane %v194, 6
        %s951 = vtos %v950
        %v952 = vstv %s951
        %v954 = vmul.f32 %v952, %v341
        %955 = vrot.lane.b32.xlu0 %v950, 127
        %v956 = vpop.permute.xlu0 %955
        %s957 = vtos %v956
        %v958 = vstv %s957
        %v960 = vmul.f32 %v958, %v487
        %v961 = vadd.f32 %v954, %v960
        %962 = vrot.lane.b32.xlu0 %v950, 126
        %v963 = vpop.permute.xlu0 %962
        %s964 = vtos %v963
        %v965 = vstv %s964
        %v967 = vmul.f32 %v965, %v633
        %v968 = vadd.f32 %v961, %v967
        %969 = vrot.lane.b32.xlu0 %v950, 125
        %v970 = vpop.permute.xlu0 %969
        %s971 = vtos %v970
        %v972 = vstv %s971
        %v974 = vmul.f32 %v972, %v779
        %v975 = vadd.f32 %v968, %v974
        %s976 = scalar_lea.vmem %s179, 48 [#allocation5]
        %977 = vst.msk [vmem:[%s976] sm:$0xff] %vm808, %v975
        %v978 = vrot.slane %v194, 7
        %s979 = vtos %v978
        %v980 = vstv %s979
        %v982 = vmul.f32 %v980, %v341
        %983 = vrot.lane.b32.xlu0 %v978, 127
        %v984 = vpop.permute.xlu0 %983
        %s985 = vtos %v984
        %v986 = vstv %s985
        %v988 = vmul.f32 %v986, %v487
        %v989 = vadd.f32 %v982, %v988
        %990 = vrot.lane.b32.xlu0 %v978, 126
        %v991 = vpop.permute.xlu0 %990
        %s992 = vtos %v991
        %v993 = vstv %s992
        %v995 = vmul.f32 %v993, %v633
        %v996 = vadd.f32 %v989, %v995
        %997 = vrot.lane.b32.xlu0 %v978, 125
        %v998 = vpop.permute.xlu0 %997
        %s999 = vtos %v998
        %v1000 = vstv %s999
        %v1002 = vmul.f32 %v1000, %v779
        %v1003 = vadd.f32 %v996, %v1002
        %s1004 = scalar_lea.vmem %s179, 56 [#allocation5]
        %1005 = vst.msk [vmem:[%s1004] sm:$0xff] %vm808, %v1003
        %s1006 = sand.u32 %s90, 1
        %s1007 = scalar_lea.sflag [#allocation4], %s1006
        %s1008 = sand.u32 %s90, 1
        %s1009 = smul.addr %s1008, 64
        %s1010 = scalar_lea.vmem [#allocation5], %s1009
        // Predicated region
        $region33: #{tpu_custom_call.1} parent=27 // pred_check
          %p1011 = pneg %p100
        $region34: #{tpu_custom_call.1} parent=27 // pred_check_branch
          %1013 = sbr.rel (%p1011) target = $region36
        $region35: #{tpu_custom_call.1} parent=27 // pred_region
          %s1015 = ssub.s32 1024, 1024
          %1016 = vsyncadd %s1007, %s1015
          %s1017 = smul.addr %s23, 8
          %s1018 = sadd.s32 %s24, %s1017
          %s1019 = smul.addr %s1018, 128
          %s1020 = scalar_lea.hbm %s2, %s1019
          %s1021 = sshll.u32 %s1010, 4
          %s1022 = int_to_ptr.vmem [resolvable:$true] %s1021
          %1027 = dma.vmem_to_hbm [thread:$0]  %s1022, 1024, %s1020, %s1007, 128, 128, 8
        $region36: #{tpu_custom_call.1} parent=27 // pred_fallthru
          _
      $region28: #{tpu_custom_call.1} parent=5 // pred_fallthru
        _
      %p1028 = scmp.le.s32.totalorder 2, %s14
      // Predicated region
      $region37: #{tpu_custom_call.1} parent=5 // pred_check
        %p1029 = pneg %p1028
      $region38: #{tpu_custom_call.1} parent=5 // pred_check_branch
        %1031 = sbr.rel (%p1029) target = $region40
      $region39: #{tpu_custom_call.1} parent=5 // pred_region
        %s1032 = ssub.s32 %s14, 2
        // Predicated region
        $region41: #{tpu_custom_call.1} parent=39 // pred_check
          %p1033 = pneg %p106
        $region42: #{tpu_custom_call.1} parent=39 // pred_check_branch
          %1035 = sbr.rel (%p1033) target = $region44
        $region43: #{tpu_custom_call.1} parent=39 // pred_region
          %s1036 = sand.u32 %s91, 1
          %s1037 = scalar_lea.sflag [#allocation4], %s1036
          %s1038 = sand.u32 %s91, 1
          %s1039 = smul.addr %s1038, 64
          %s1040 = scalar_lea.vmem [#allocation5], %s1039
          %1041 = dma.done %s1037, 1024
        $region44: #{tpu_custom_call.1} parent=39 // pred_fallthru
          _
      $region40: #{tpu_custom_call.1} parent=5 // pred_fallthru
        _
    $region6: #{tpu_custom_call.1} parent=1 // loop_footer
      %s18 = sadd.s32 1, %s14
    $region7: #{tpu_custom_call.1} parent=1 // loop_footer_branch
      %13 = sbr.rel target = $region3
    $region8: #{tpu_custom_call.1} parent=1 // loop_exit
      _
    %1042 = vsyncpa [#allocation3], 1
    %s1043 = scalar_lea.sflag [#allocation3], 1
    %1044 = vsyncpa %s1043, 1
    %1045 = vsyncpa [#allocation4], 1
    %s1046 = scalar_lea.sflag [#allocation4], 1
    %1047 = vsyncpa %s1046, 1

</llo_original>
